<compile_context>
chip_gen: v7x
topology: tpu7x:2x2x1
jax: 0.10.0
libtpu: 0.0.40
codegen_flags: <defaults>
</compile_context>

<pallas_src>
import math

import jax
import jax.numpy as jnp
from jax.experimental import pallas as pl
from jax.experimental.pallas import tpu as pltpu

SQRT2_OVER_4 = math.sqrt(2.0) / 4.0


# ------------------------- weight expansion (glue, plain JAX) ----------------
def expand_weight(w, irrep):
    """w: (outs, in_ch, K//2, K//2) -> (outs, in_ch, K, K), D8 irrep symmetrization."""
    if irrep == "E":
        w = 0.5 * w
        w2 = jnp.concatenate([w, jnp.flip(w, axis=-2)], axis=-2)
        return jnp.concatenate([w2, -jnp.flip(w2, axis=-1)], axis=-1)
    w = SQRT2_OVER_4 * w
    w_rot = jnp.rot90(w, k=1, axes=(2, 3))
    w_rot2 = jnp.rot90(w, k=2, axes=(2, 3))
    w_rot3 = jnp.rot90(w, k=3, axes=(2, 3))
    if irrep in ("A1", "A2"):
        weight = jnp.concatenate(
            [jnp.concatenate([w, w_rot], axis=-2),
             jnp.concatenate([w_rot3, w_rot2], axis=-2)], axis=-1)
    else:  # B1, B2
        weight = jnp.concatenate(
            [jnp.concatenate([w, -w_rot], axis=-2),
             jnp.concatenate([-w_rot3, w_rot2], axis=-2)], axis=-1)
    if irrep in ("A1", "B1"):
        return weight + jnp.flip(weight, axis=-1)
    return weight - jnp.flip(weight, axis=-1)


# ------------------------------- Pallas kernel --------------------------------
def _conv_matmul_kernel(p_ref, w_ref, b_ref, o_ref):
    # p_ref: (TM, Kd) bf16 patch tile, w_ref: (Kd, Cout_pad) bf16 weights,
    # b_ref: (1, Cout_pad) f32 bias, o_ref: (TM, Cout_pad) f32 output tile.
    acc = jnp.dot(p_ref[...], w_ref[...], preferred_element_type=jnp.float32)
    o_ref[...] = (acc + b_ref[...]).astype(o_ref.dtype)


# ------------------------------- forward wrapper -------------------------------
def lift_d8_forward(img, params, kernel_size, stride):
    N, C, H, W = img.shape
    K, S = kernel_size, stride
    Ho = (H - K) // S + 1
    Wo = (W - K) // S + 1

    # Expanded weights for the 8 output branches (ordering matches torch forward).
    w_A1 = expand_weight(params["A1"], "A1")
    w_A2 = expand_weight(params["A2"], "A2")
    w_B1 = expand_weight(params["B1"], "B1")
    w_B2 = expand_weight(params["B2"], "B2")
    w_El = expand_weight(params["El"], "E")
    w_Er = expand_weight(params["Er"], "E")
    ws = [w_A1, w_A2, w_B1, w_B2,
          w_El, jnp.rot90(w_El, k=1, axes=(2, 3)),
          w_Er, jnp.rot90(w_Er, k=1, axes=(2, 3))]
    outs = w_A1.shape[0]
    Cout = 8 * outs
    Kd = C * K * K
    w_mat = jnp.concatenate(ws, axis=0).reshape(Cout, Kd).T  # (Kd, Cout)

    # Lane-dense output: pad columns up to a multiple of 128.
    Cout_pad = ((Cout + 127) // 128) * 128
    if Cout_pad != Cout:
        w_mat = jnp.pad(w_mat, ((0, 0), (0, Cout_pad - Cout)))

    bias = jnp.zeros((Cout_pad,), jnp.float32)
    if params.get("bias_A1") is not None:
        bias = bias.at[:outs].set(params["bias_A1"])  # bias only on the A1 branch
    bias = bias.reshape(1, Cout_pad)

    # im2col: column index = c*K*K + kh*K + kw, matching weight flattening.
    if S == K:
        # Non-overlapping patches: pure reshape/transpose, no K*K HBM duplication.
        p = img.reshape(N, C, Ho, K, Wo, K)
        p = p.transpose(0, 2, 4, 1, 3, 5).reshape(N * Ho * Wo, Kd)
    else:
        # General strided case (glue fallback).
        cols = []
        for kh in range(K):
            for kw in range(K):
                cols.append(img[:, :, kh:kh + S * (Ho - 1) + 1:S,
                                      kw:kw + S * (Wo - 1) + 1:S])  # (N, C, Ho, Wo)
        p = jnp.stack(cols, axis=2).reshape(N, Kd, Ho * Wo)
        p = p.transpose(0, 2, 1).reshape(N * Ho * Wo, Kd)

    M = N * Ho * Wo
    # Row tile: multiple of 128 (MXU row granularity), capped at 256.
    TM = min(256, ((M + 127) // 128) * 128)
    M_pad = ((M + TM - 1) // TM) * TM
    if M_pad != M:
        p = jnp.pad(p, ((0, M_pad - M), (0, 0)))

    # bf16 MXU inputs, f32 accumulation (tolerance easily covered).
    p_bf = p.astype(jnp.bfloat16)
    w_bf = w_mat.astype(jnp.bfloat16)

    # Explicit VMEM budget: double-buffered patch/out tiles + resident weight/bias.
    vmem_need = 2 * (TM * Kd * 2 + Kd * Cout_pad * 2 + TM * Cout_pad * 4 + Cout_pad * 4)
    vmem_limit = int(min(32 << 20, max(8 << 20, 2 * vmem_need)))

    out_flat = pl.pallas_call(
        _conv_matmul_kernel,
        out_shape=jax.ShapeDtypeStruct((M_pad, Cout_pad), jnp.float32),
        grid_spec=pl.GridSpec(
            grid=(M_pad // TM,),
            in_specs=[
                pl.BlockSpec((TM, Kd), lambda i: (i, 0)),
                pl.BlockSpec((Kd, Cout_pad), lambda i: (0, 0)),
                pl.BlockSpec((1, Cout_pad), lambda i: (0, 0)),
            ],
            out_specs=pl.BlockSpec((TM, Cout_pad), lambda i: (i, 0)),
        ),
        compiler_params=pltpu.CompilerParams(
            dimension_semantics=("parallel",),
            vmem_limit_bytes=vmem_limit),
    )(p_bf, w_bf, bias)

    # Slice off M/Cout padding, reshape back to NCHW, split into the 8 branches.
    out = out_flat[:M, :Cout].reshape(N, Ho, Wo, Cout).transpose(0, 3, 1, 2)
    return tuple(out[:, i * outs:(i + 1) * outs] for i in range(8))


# ------------------------------- param init -----------------------------------
def init_params(key, in_channels, out_channels, kernel_size, bias):
    assert out_channels % 8 == 0
    outs = out_channels // 8
    kh = kernel_size // 2
    fan_in = in_channels * kh * kh
    bound = 1.0 / math.sqrt(fan_in)   # kaiming_uniform(a=sqrt(5)) bound
    keys = jax.random.split(key, 7)

    def w(k):
        return jax.random.uniform(k, (outs, in_channels, kh, kh),
                                  jnp.float32, -bound, bound)

    params = {"A1": w(keys[0]), "A2": w(keys[1]), "B1": w(keys[2]),
              "B2": w(keys[3]), "El": w(keys[4]), "Er": w(keys[5])}
    params["bias_A1"] = (jax.random.uniform(keys[6], (outs,), jnp.float32,
                                            -bound, bound) if bias else None)
    return params


# ------------------------------- reference (plain JAX) -------------------------
def ref_forward(img, params, K, S):
    def conv(w, b=None):
        out = jax.lax.conv_general_dilated(
            img, w, (S, S), "VALID",
            dimension_numbers=("NCHW", "OIHW", "NCHW"))
        if b is not None:
            out = out + b.reshape(1, -1, 1, 1)
        return out

    w_A1 = expand_weight(params["A1"], "A1")
    w_A2 = expand_weight(params["A2"], "A2")
    w_B1 = expand_weight(params["B1"], "B1")
    w_B2 = expand_weight(params["B2"], "B2")
    w_El = expand_weight(params["El"], "E")
    w_Er = expand_weight(params["Er"], "E")
    return (conv(w_A1, params["bias_A1"]), conv(w_A2), conv(w_B1), conv(w_B2),
            conv(w_El), conv(jnp.rot90(w_El, k=1, axes=(2, 3))),
            conv(w_Er), conv(jnp.rot90(w_Er, k=1, axes=(2, 3))))


if __name__ == "__main__":
    N, C, H, W = 2, 4, 16, 16
    out_channels, K, S = 8, 4, 4
    use_bias = True

    key = jax.random.PRNGKey(0)
    k_img, k_par = jax.random.split(key)
    img = jax.random.normal(k_img, (N, C, H, W), jnp.float32)
    params = init_params(k_par, C, out_channels, K, use_bias)

    outs = jax.block_until_ready(lift_d8_forward(img, params, K, S))
    refs = jax.block_until_ready(ref_forward(img, params, K, S))

    assert len(outs) == 8
    for o, r in zip(outs, refs):
        assert o.shape == r.shape, (o.shape, r.shape)
        assert jnp.allclose(o, r, rtol=5e-2, atol=5e-2), float(jnp.max(jnp.abs(o - r)))

    print("KERNEL_OK")
</pallas_src>

<mosaic_0001>
module attributes {stable_mosaic.version = 11 : i64} {
  func.func @_conv_matmul_kernel(%arg0: i32, %arg1: memref<128x64xbf16, #tpu.memory_space<vmem>>, %arg2: memref<64x128xbf16, #tpu.memory_space<vmem>>, %arg3: memref<1x128xf32, #tpu.memory_space<vmem>>, %arg4: memref<128x128xf32, #tpu.memory_space<vmem>>) attributes {dimension_semantics = [#tpu.dimension_semantics<parallel>], iteration_bounds = array<i64: 1>, scalar_prefetch = 0 : i64, scratch_operands = 0 : i64, tpu.core_type = #tpu.core_type<tc>, window_params = [{transform_indices = @transform_0, window_bounds = array<i64: 128, 64>}, {pipeline_mode = #tpu.pipeline_mode<synchronous>, transform_indices = @transform_1, window_bounds = array<i64: 64, 128>}, {pipeline_mode = #tpu.pipeline_mode<synchronous>, transform_indices = @transform_2, window_bounds = array<i64: 1, 128>}, {transform_indices = @transform_3, window_bounds = array<i64: 128, 128>}]} {
    %c0 = arith.constant 0 : index
    %c0_0 = arith.constant 0 : index
    %0 = vector.load %arg1[%c0, %c0_0] : memref<128x64xbf16, #tpu.memory_space<vmem>>, vector<128x64xbf16>
    %c0_1 = arith.constant 0 : index
    %c0_2 = arith.constant 0 : index
    %1 = vector.load %arg2[%c0_1, %c0_2] : memref<64x128xbf16, #tpu.memory_space<vmem>>, vector<64x128xbf16>
    %cst = arith.constant dense<0.000000e+00> : vector<128x128xf32>
    %2 = tpu.matmul %0, %1, %cst {dimension_numbers = #tpu.dot_dimension_numbers<[1], [0], [0], [1], [0, 0, 1, 1], [], []>} : vector<128x64xbf16>, vector<64x128xbf16>, vector<128x128xf32> -> vector<128x128xf32>
    %c0_3 = arith.constant 0 : index
    %c0_4 = arith.constant 0 : index
    %3 = vector.load %arg3[%c0_3, %c0_4] : memref<1x128xf32, #tpu.memory_space<vmem>>, vector<1x128xf32>
    %4 = vector.broadcast %3 : vector<1x128xf32> to vector<128x128xf32>
    %5 = arith.addf %2, %4 : vector<128x128xf32>
    %c0_5 = arith.constant 0 : index
    %c0_6 = arith.constant 0 : index
    %6 = vector.load %arg4[%c0_5, %c0_6] : memref<128x128xf32, #tpu.memory_space<vmem>>, vector<128x128xf32>
    tpu.vector_store %arg4[%c0_5, %c0_6], %5 {strides = array<i32>} : memref<128x128xf32, #tpu.memory_space<vmem>>, vector<128x128xf32>,
    return
  }
  func.func @transform_0(%arg0: i32) -> (i32, i32) {
    %c0_i32 = arith.constant 0 : i32
    %c0_i32_0 = arith.constant 0 : i32
    return %arg0, %c0_i32 : i32, i32
  }
  func.func @transform_1(%arg0: i32) -> (i32, i32) {
    %c0_i32 = arith.constant 0 : i32
    %c0_i32_0 = arith.constant 0 : i32
    %c0_i32_1 = arith.constant 0 : i32
    return %c0_i32, %c0_i32_0 : i32, i32
  }
  func.func @transform_2(%arg0: i32) -> (i32, i32) {
    %c0_i32 = arith.constant 0 : i32
    %c0_i32_0 = arith.constant 0 : i32
    %c0_i32_1 = arith.constant 0 : i32
    return %c0_i32, %c0_i32_0 : i32, i32
  }
  func.func @transform_3(%arg0: i32) -> (i32, i32) {
    %c0_i32 = arith.constant 0 : i32
    %c0_i32_0 = arith.constant 0 : i32
    return %arg0, %c0_i32 : i32, i32
  }
}

</mosaic_0001>

<llo_original>
// kernel: tpu_custom_call.1
$region0: #{tpu_custom_call.1}
  #allocation0 [shape = 'u32[]', space=smem, size = 0x4, offset = 0x4, fixed_abs, tag = 'smem constant byte address 0x4 - core index']
  #allocation1 [shape = 'u32[144,128]{1,0:T(1,128)}', space=vmem, size = 0x12000, scoped, tag = 'internal scratch']
  %s0 = inlined_call_operand.vmem [shape: bf16[128,64], index: 0, kind: input, shape index: {}]
  %s1 = inlined_call_operand.vmem [shape: bf16[64,128], index: 1, kind: input, shape index: {}]
  %s2 = inlined_call_operand.vmem [shape: f32[1,128], index: 2, kind: input, shape index: {}]
  %s3 = inlined_call_operand.hbm [shape: f32[128,128], index: 3, kind: output, shape index: {}]
  %s4 = sld [smem:[#allocation0]]
  $region22: #{tpu_custom_call.1} parent=0
    _
  %s6 = ssub.s32 1, %s4
  %s7 = scalar_select 0, %s6, %s4
  $region1: #{tpu_custom_call.1} parent=0
    #allocation2 [shape = 'u8[65536]{0}', space=vmem, size = 0x10000, scoped, tag = 'output window, operand 0, single buffered']
    #allocation3 [shape = 's32[1]{0}', space=sflag, size = 0x4, scoped, tag = 'scoped memory for tpu_custom_call.1']
    %8 = vsyncpa [#allocation3], 0
    // Predicated region
    $region2: #{tpu_custom_call.1} parent=1 // pred_check
      _
    $region3: #{tpu_custom_call.1} parent=1 // pred_check_branch
      %10 = sbr.rel (0) target = $region5
    $region4: #{tpu_custom_call.1} parent=1 // pred_region
      _
    $region5: #{tpu_custom_call.1} parent=1 // pred_fallthru
      _
    // Predicated region
    $region6: #{tpu_custom_call.1} parent=1 // pred_check
      _
    $region7: #{tpu_custom_call.1} parent=1 // pred_check_branch
      %12 = sbr.rel (0) target = $region9
    $region8: #{tpu_custom_call.1} parent=1 // pred_region
      _
    $region9: #{tpu_custom_call.1} parent=1 // pred_fallthru
      _
    // Predicated region
    $region10: #{tpu_custom_call.1} parent=1 // pred_check
      _
    $region11: #{tpu_custom_call.1} parent=1 // pred_check_branch
      %14 = sbr.rel (0) target = $region13
    $region12: #{tpu_custom_call.1} parent=1 // pred_region
      _
    $region13: #{tpu_custom_call.1} parent=1 // pred_fallthru
      _
    %v16 = vld [vmem:[%s0] sm:$0xf]
    %v17 = vld [vmem:[%s0 + $0x4] sm:$0xf]
    %v18 = vld [vmem:[%s0 + $0x8] sm:$0xf]
    %v19 = vld [vmem:[%s0 + $0xc] sm:$0xf]
    %v20 = vld [vmem:[%s0 + $0x10] sm:$0xf]
    %v21 = vld [vmem:[%s0 + $0x14] sm:$0xf]
    %v22 = vld [vmem:[%s0 + $0x18] sm:$0xf]
    %v23 = vld [vmem:[%s0 + $0x1c] sm:$0xf]
    %v24 = vld [vmem:[%s0 + $0x20] sm:$0xf]
    %v25 = vld [vmem:[%s0 + $0x24] sm:$0xf]
    %v26 = vld [vmem:[%s0 + $0x28] sm:$0xf]
    %v27 = vld [vmem:[%s0 + $0x2c] sm:$0xf]
    %v28 = vld [vmem:[%s0 + $0x30] sm:$0xf]
    %v29 = vld [vmem:[%s0 + $0x34] sm:$0xf]
    %v30 = vld [vmem:[%s0 + $0x38] sm:$0xf]
    %v31 = vld [vmem:[%s0 + $0x3c] sm:$0xf]
    %v32 = vld [vmem:[%s1] sm:$0xf]
    %v33 = vld [vmem:[%s1 + $0x4] sm:$0xf]
    %v34 = vld [vmem:[%s1 + $0x8] sm:$0xf]
    %v35 = vld [vmem:[%s1 + $0xc] sm:$0xf]
    %v36 = vld [vmem:[%s1 + $0x10] sm:$0xf]
    %v37 = vld [vmem:[%s1 + $0x14] sm:$0xf]
    %v38 = vld [vmem:[%s1 + $0x18] sm:$0xf]
    %v39 = vld [vmem:[%s1 + $0x1c] sm:$0xf]
    %v40 = vld [vmem:[%s2] sm:$0x1]
    %v42 = vlaneseq
    %v43 = vshrl.u32 %v42, 7
    %v44 = vsub.s32 0, %v43
    %v45 = vrot.slane %v40, %v44
    %v63 = vunpack.c.l.b16 %v16
    %v64 = vunpack.c.l.b16 %v17
    %v65 = vunpack.c.l.b16 %v18
    %v66 = vunpack.c.l.b16 %v19
    %v67 = vunpack.c.l.b16 %v20
    %v68 = vunpack.c.l.b16 %v21
    %v69 = vunpack.c.l.b16 %v22
    %v70 = vunpack.c.l.b16 %v23
    %v71 = vunpack.c.l.b16 %v24
    %v72 = vunpack.c.l.b16 %v25
    %v73 = vunpack.c.l.b16 %v26
    %v74 = vunpack.c.l.b16 %v27
    %v75 = vunpack.c.l.b16 %v28
    %v76 = vunpack.c.l.b16 %v29
    %v77 = vunpack.c.l.b16 %v30
    %v78 = vunpack.c.l.b16 %v31
    %v79 = vpack.c.b16 %v64, %v63
    %v80 = vpack.c.b16 %v66, %v65
    %v81 = vpack.c.b16 %v68, %v67
    %v82 = vpack.c.b16 %v70, %v69
    %v83 = vpack.c.b16 %v72, %v71
    %v84 = vpack.c.b16 %v74, %v73
    %v85 = vpack.c.b16 %v76, %v75
    %v86 = vpack.c.b16 %v78, %v77
    %v95 = vunpack.c.l.b16 %v32
    %v96 = vunpack.c.l.b16 %v33
    %v97 = vunpack.c.l.b16 %v34
    %v98 = vunpack.c.l.b16 %v35
    %v99 = vunpack.c.l.b16 %v36
    %v100 = vunpack.c.l.b16 %v37
    %v101 = vunpack.c.l.b16 %v38
    %v102 = vunpack.c.l.b16 %v39
    %v103 = vpack.c.b16 %v96, %v95
    %v104 = vpack.c.b16 %v98, %v97
    %v105 = vpack.c.b16 %v100, %v99
    %v106 = vpack.c.b16 %v102, %v101
    %vm111 = vcmask 523264
    %v113 = vsel %vm111, %v79, 0
    %v116 = vsel %vm111, %v80, 0
    %v119 = vsel %vm111, %v81, 0
    %v122 = vsel %vm111, %v82, 0
    %v125 = vsel %vm111, %v83, 0
    %v128 = vsel %vm111, %v84, 0
    %v131 = vsel %vm111, %v85, 0
    %v134 = vsel %vm111, %v86, 0
    %136 = vmatprep.subr.bf16.mxu0 0
    %137 = vmatpush1.bf16.msra.mxu0 %v103
    %138 = vmatprep.subr.bf16.mxu0 0
    %139 = vmatpush1.bf16.msra.mxu0 %v104
    %140 = vmatprep.subr.bf16.mxu0 0
    %141 = vmatpush1.bf16.msra.mxu0 %v105
    %142 = vmatprep.subr.bf16.mxu0 0
    %143 = vmatpush1.bf16.msra.mxu0 %v106
    %144 = vmatprep.subr.bf16.mxu0 0
    %145 = vmatpush1.bf16.msra.mxu0 0
    %146 = vmatprep.subr.bf16.mxu0 0
    %147 = vmatpush1.bf16.msra.mxu0 0
    %148 = vmatprep.subr.bf16.mxu0 0
    %149 = vmatpush1.bf16.msra.mxu0 0
    %150 = vmatprep.subr.bf16.mxu0 0
    %151 = vmatpush1.bf16.msra.mxu0 0
    %152 = vmatprep.subr.bf16.mxu0 0
    %153 = vmatpush1.bf16.msra.mxu0 0
    %154 = vmatprep.subr.bf16.mxu0 0
    %155 = vmatpush1.bf16.msra.mxu0 0
    %156 = vmatprep.subr.bf16.mxu0 0
    %157 = vmatpush1.bf16.msra.mxu0 0
    %158 = vmatprep.subr.bf16.mxu0 0
    %159 = vmatpush1.bf16.msra.mxu0 0
    %160 = vmatprep.subr.bf16.mxu0 0
    %161 = vmatpush1.bf16.msra.mxu0 0
    %162 = vmatprep.subr.bf16.mxu0 0
    %163 = vmatpush1.bf16.msra.mxu0 0
    %164 = vmatprep.subr.bf16.mxu0 0
    %165 = vmatpush1.bf16.msra.mxu0 0
    %166 = vmatprep.subr.bf16.mxu0 0
    %167 = vmatpush1.bf16.msra.mxu0 0
    %168 = vmatprep.mubr.bf16.mxu0 0
    %169 = vmatmul.mubr.bf16.gmra.mrb[0].mxu0 %v113
    %v170 = vpop.f32.mrb[0].mxu0
    %v171 = vadd.f32 %v45, %v170
    %v172 = vpop.f32.mrb[0].mxu0
    %v173 = vpop.f32.mrb[0].mxu0
    %v174 = vadd.f32 %v45, %v173
    %v175 = vpop.f32.mrb[0].mxu0
    %176 = vmatprep.mubr.bf16.mxu0 0
    %177 = vmatmul.mubr.bf16.gmra.mrb[0].mxu0 %v116
    %v178 = vpop.f32.mrb[0].mxu0
    %v179 = vadd.f32 %v45, %v178
    %v180 = vpop.f32.mrb[0].mxu0
    %v181 = vpop.f32.mrb[0].mxu0
    %v182 = vadd.f32 %v45, %v181
    %v183 = vpop.f32.mrb[0].mxu0
    %184 = vmatprep.mubr.bf16.mxu0 0
    %185 = vmatmul.mubr.bf16.gmra.mrb[0].mxu0 %v119
    %v186 = vpop.f32.mrb[0].mxu0
    %v187 = vadd.f32 %v45, %v186
    %v188 = vpop.f32.mrb[0].mxu0
    %v189 = vpop.f32.mrb[0].mxu0
    %v190 = vadd.f32 %v45, %v189
    %v191 = vpop.f32.mrb[0].mxu0
    %192 = vmatprep.mubr.bf16.mxu0 0
    %193 = vmatmul.mubr.bf16.gmra.mrb[0].mxu0 %v122
    %v194 = vpop.f32.mrb[0].mxu0
    %v195 = vadd.f32 %v45, %v194
    %v196 = vpop.f32.mrb[0].mxu0
    %v197 = vpop.f32.mrb[0].mxu0
    %v198 = vadd.f32 %v45, %v197
    %v199 = vpop.f32.mrb[0].mxu0
    %200 = vmatprep.mubr.bf16.mxu0 0
    %201 = vmatmul.mubr.bf16.gmra.mrb[0].mxu0 %v125
    %v202 = vpop.f32.mrb[0].mxu0
    %v203 = vadd.f32 %v45, %v202
    %v204 = vpop.f32.mrb[0].mxu0
    %v205 = vpop.f32.mrb[0].mxu0
    %v206 = vadd.f32 %v45, %v205
    %v207 = vpop.f32.mrb[0].mxu0
    %208 = vmatprep.mubr.bf16.mxu0 0
    %209 = vmatmul.mubr.bf16.gmra.mrb[0].mxu0 %v128
    %v210 = vpop.f32.mrb[0].mxu0
    %v211 = vadd.f32 %v45, %v210
    %v212 = vpop.f32.mrb[0].mxu0
    %v213 = vpop.f32.mrb[0].mxu0
    %v214 = vadd.f32 %v45, %v213
    %v215 = vpop.f32.mrb[0].mxu0
    %216 = vmatprep.mubr.bf16.mxu0 0
    %217 = vmatmul.mubr.bf16.gmra.mrb[0].mxu0 %v131
    %v218 = vpop.f32.mrb[0].mxu0
    %v219 = vadd.f32 %v45, %v218
    %v220 = vpop.f32.mrb[0].mxu0
    %v221 = vpop.f32.mrb[0].mxu0
    %v222 = vadd.f32 %v45, %v221
    %v223 = vpop.f32.mrb[0].mxu0
    %224 = vmatprep.mubr.bf16.mxu0 0
    %225 = vmatmul.mubr.bf16.gmra.mrb[0].mxu0 %v134
    %v226 = vpop.f32.mrb[0].mxu0
    %v227 = vadd.f32 %v45, %v226
    %v228 = vpop.f32.mrb[0].mxu0
    %v229 = vpop.f32.mrb[0].mxu0
    %v230 = vadd.f32 %v45, %v229
    %v231 = vpop.f32.mrb[0].mxu0
    %232 = vdwg.mxu0
    %233 = vst [vmem:[#allocation2] sm:$0xff] %v171
    %234 = vst [vmem:[#allocation2 + $0x8] sm:$0xff] %v174
    %235 = vst [vmem:[#allocation2 + $0x10] sm:$0xff] %v179
    %236 = vst [vmem:[#allocation2 + $0x18] sm:$0xff] %v182
    %237 = vst [vmem:[#allocation2 + $0x20] sm:$0xff] %v187
    %238 = vst [vmem:[#allocation2 + $0x28] sm:$0xff] %v190
    %239 = vst [vmem:[#allocation2 + $0x30] sm:$0xff] %v195
    %240 = vst [vmem:[#allocation2 + $0x38] sm:$0xff] %v198
    %241 = vst [vmem:[#allocation2 + $0x40] sm:$0xff] %v203
    %242 = vst [vmem:[#allocation2 + $0x48] sm:$0xff] %v206
    %243 = vst [vmem:[#allocation2 + $0x50] sm:$0xff] %v211
    %244 = vst [vmem:[#allocation2 + $0x58] sm:$0xff] %v214
    %245 = vst [vmem:[#allocation2 + $0x60] sm:$0xff] %v219
    %246 = vst [vmem:[#allocation2 + $0x68] sm:$0xff] %v222
    %247 = vst [vmem:[#allocation2 + $0x70] sm:$0xff] %v227
    %248 = vst [vmem:[#allocation2 + $0x78] sm:$0xff] %v230
    // Predicated region
    $region14: #{tpu_custom_call.1} parent=1 // pred_check
      _
    $region15: #{tpu_custom_call.1} parent=1 // pred_check_branch
      %250 = sbr.rel (0) target = $region17
    $region16: #{tpu_custom_call.1} parent=1 // pred_region
      %s252 = ssub.s32 2048, 2048
      %253 = vsyncadd [#allocation3], %s252
      %s254 = sshll.u32 [#allocation2], 4
      %s255 = int_to_ptr.vmem [resolvable:$true] %s254
      %260 = dma.vmem_to_hbm [thread:$0]  %s255, 2048, %s3, [#allocation3], 128, 128, 8
    $region17: #{tpu_custom_call.1} parent=1 // pred_fallthru
      _
    // Predicated region
    $region18: #{tpu_custom_call.1} parent=1 // pred_check
      _
    $region19: #{tpu_custom_call.1} parent=1 // pred_check_branch
      %262 = sbr.rel (0) target = $region21
    $region20: #{tpu_custom_call.1} parent=1 // pred_region
      %263 = dma.done [#allocation3], 2048
    $region21: #{tpu_custom_call.1} parent=1 // pred_fallthru
      _
    %264 = vsyncpa [#allocation3], 1

</llo_original>
